<compile_context>
chip_gen: v7x
topology: tpu7x:2x2x1
jax: 0.10.0
libtpu: 0.0.40
codegen_flags: <defaults>
</compile_context>

<pallas_src>
import jax
import jax.numpy as jnp
from jax import lax
from jax.experimental import pallas as pl
from jax.experimental.pallas import tpu as pltpu


_ROW_ALIGN = 16  # bf16 sublane packing wants 16-row tiles; also fine for f32


def _round_up(x, m):
    return ((x + m - 1) // m) * m


def _tpu_generation_info():
    """Conservative per-generation knobs: (scoped_vmem_budget_bytes, bf16_valu, row_cap)."""
    kind = ""
    try:
        kind = jax.devices()[0].device_kind.lower()
    except Exception:
        pass
    if "v7" in kind or "tpu7" in kind:
        # 64 MiB physical / 32 MiB scoped default, bf16 VALU, 2 TensorCores.
        return 32 * 1024 * 1024, True, 2048
    if "v6" in kind or "tpu6" in kind:
        # 128 MiB physical / 32 MiB scoped default, bf16 VALU.
        return 32 * 1024 * 1024, True, 4096
    # v5e / v5p / v4 / unknown: 16 MiB scoped default, no bf16 VALU/EUP -> keep f32 hidden.
    return 16 * 1024 * 1024, False, 2048


def _pose_decoder_kernel(feat_ref, w1_ref, b1_ref, w23_ref, b23_ref, out_ref):
    # Stage 1: hidden = relu(feat @ W1 + b1). The hidden dtype is carried by b1's dtype
    # (bf16 on v6e/v7x fast path, f32 on v5e / exact path), so the MXU result is emitted
    # directly in that dtype -- no separate f32 materialisation followed by a cast pass.
    h = jnp.dot(feat_ref[...], w1_ref[...], preferred_element_type=b1_ref.dtype)
    h = jnp.maximum(h + b1_ref[...], 0.0)

    # Stage 2: fused heads [trans(3) | quat(4) | zero pad(1)] -> one MXU matmul, f32 acc.
    # Quat unit bias [1,0,0,0] is already folded into b23 on the host.
    tq = jnp.dot(h.astype(w23_ref.dtype), w23_ref[...],
                 preferred_element_type=jnp.float32) + b23_ref[...]

    # Epilogue on the whole 8-wide slab (single lane group): lane-mask combine instead of
    # sub-vreg slices + concatenate. Lane 7 stays exactly zero (zero weight col + zero bias).
    lane = lax.broadcasted_iota(jnp.int32, tq.shape, dimension=1)
    quat_mask = jnp.logical_and(lane >= 3, lane < 7).astype(tq.dtype)
    sumsq = jnp.sum(tq * tq * quat_mask, axis=-1, keepdims=True)
    inv_norm = lax.rsqrt(1e-12 + sumsq)                      # EUP slot (free under MXU)
    out = jnp.where(lane < 3, jnp.tanh(tq), tq * inv_norm)
    out_ref[...] = out.astype(out_ref.dtype)


def pose_decoder_pallas(feat, params, *, compute_dtype=jnp.bfloat16, tile_n=None):
    """feat: array of shape (*, F). Returns array of shape (*, 7)."""
    w1, b1, w2, b2, w3, b3 = params
    F = feat.shape[-1]
    H = w1.shape[1]
    lead_shape = feat.shape[:-1]

    scoped_budget, bf16_valu, row_cap = _tpu_generation_info()
    cd = jnp.dtype(compute_dtype)
    # bf16 hidden only where the VALU handles bf16 natively (v6e/v7x); otherwise f32.
    hidden_dtype = compute_dtype if bf16_valu else jnp.float32
    hd = jnp.dtype(hidden_dtype)

    # Fuse the two heads into a single (H, 8) matmul; fold [1,0,0,0] into the quat bias.
    w23 = jnp.concatenate([w2, w3, jnp.zeros((H, 1), w2.dtype)], axis=1).astype(compute_dtype)
    quat_unit = jnp.array([[1.0, 0.0, 0.0, 0.0]], jnp.float32)
    b23 = jnp.concatenate(
        [b2.astype(jnp.float32), b3.astype(jnp.float32) + quat_unit,
         jnp.zeros((1, 1), jnp.float32)], axis=1)
    w1c = w1.astype(compute_dtype)
    b1c = b1.astype(hidden_dtype)

    feat2d = feat.reshape(-1, F).astype(compute_dtype)
    n = feat2d.shape[0]
    if n == 0:  # empty leading dims
        return jnp.zeros((*lead_shape, 7), jnp.float32)

    # --- tile selection against the scoped-VMEM budget --------------------------------
    per_row = (2 * F * cd.itemsize        # feat tile, double-buffered
               + H * hd.itemsize          # hidden activation
               + 8 * 4 * 8                # 8-wide f32 epilogue temporaries (tq, tanh, ...)
               + 2 * 8 * 4)               # f32 out tile, double-buffered
    fixed = 2 * (F * H + H * 8 + H + 8) * 4 + (2 << 20)  # weights/biases (x2 buf) + scratch slack
    budget_rows = max((int(scoped_budget * 0.75) - fixed) // per_row, _ROW_ALIGN)

    if tile_n is None:
        cap = max(min(row_cap, budget_rows), _ROW_ALIGN)
        steps = max(pl.cdiv(n, cap), 1)
        if steps > 1 and steps % 2:       # keep both v7x TensorCores equally busy
            steps += 1
        tile_n = pl.cdiv(n, steps)
    tile_n = max(_round_up(tile_n, _ROW_ALIGN), _ROW_ALIGN)

    grid = (pl.cdiv(n, tile_n),)
    est_bytes = tile_n * per_row + fixed
    vmem_limit = int(min(max(2 * est_bytes, 16 << 20), 32 << 20))

    out8 = pl.pallas_call(
        _pose_decoder_kernel,
        out_shape=jax.ShapeDtypeStruct((n, 8), jnp.float32),
        grid_spec=pltpu.PrefetchScalarGridSpec(
            num_scalar_prefetch=0,
            grid=grid,
            in_specs=[
                pl.BlockSpec((tile_n, F), lambda i: (i, 0)),  # feat rows (streamed; tail masked)
                pl.BlockSpec((F, H), lambda i: (0, 0)),       # W1 (resident)
                pl.BlockSpec((1, H), lambda i: (0, 0)),       # b1 (in hidden dtype)
                pl.BlockSpec((H, 8), lambda i: (0, 0)),       # fused [W2 | W3 | 0]
                pl.BlockSpec((1, 8), lambda i: (0, 0)),       # fused [b2 | b3+[1,0,0,0] | 0]
            ],
            out_specs=pl.BlockSpec((tile_n, 8), lambda i: (i, 0)),
        ),
        compiler_params=pltpu.CompilerParams(
            dimension_semantics=("parallel",),
            vmem_limit_bytes=vmem_limit),
    )(feat2d, w1c, b1c, w23, b23)

    # Spec returns (*, 7); consumers able to take the 8-wide slab could skip this copy.
    return out8[:, :7].reshape(*lead_shape, 7)


def init_params(key, feat_len, hidden=512):
    """Deterministic init mirroring nn.Linear shapes (stored transposed: [in, out])."""
    k1, k2, k3, k4, k5 = jax.random.split(key, 5)

    def uinit(k, shape, fan_in):
        bound = 1.0 / jnp.sqrt(fan_in)
        return jax.random.uniform(k, shape, jnp.float32, -bound, bound)

    w1 = uinit(k1, (feat_len, hidden), feat_len)
    b1 = uinit(k2, (1, hidden), feat_len)
    w2 = uinit(k3, (hidden, 3), hidden)
    b2 = uinit(k4, (1, 3), hidden)
    w3 = uinit(k5, (hidden, 4), hidden)
    b3 = jnp.zeros((1, 4), jnp.float32)          # self.quat.bias.data.zero_()
    return (w1, b1, w2, b2, w3, b3)


def pose_decoder_ref(feat, params):
    """Plain-JAX reference replicating the PyTorch forward exactly."""
    w1, b1, w2, b2, w3, b3 = params
    h = jax.nn.relu(feat @ w1 + b1[0])
    trans = jnp.tanh(h @ w2 + b2[0])
    quat = h @ w3 + b3[0] + jnp.array([1.0, 0.0, 0.0, 0.0], jnp.float32)
    quat = quat / jnp.sqrt(1e-12 + jnp.sum(quat ** 2, axis=-1, keepdims=True))
    return jnp.concatenate([trans, quat], axis=-1)


if __name__ == "__main__":
    key = jax.random.PRNGKey(0)
    k_feat, k_param = jax.random.split(key)

    B, S, FEAT_LEN = 2, 8, 32          # input: (batch, seq, feat_len) -> output: (batch, seq, 7)
    feat = jax.random.normal(k_feat, (B, S, FEAT_LEN), jnp.float32)
    params = init_params(k_param, FEAT_LEN, hidden=512)

    ref = pose_decoder_ref(feat, params)

    # exactness path: f32 everywhere (same math as the reference)
    out_f32 = jax.block_until_ready(
        pose_decoder_pallas(feat, params, compute_dtype=jnp.float32))
    assert out_f32.shape == (B, S, 7), out_f32.shape
    assert jnp.allclose(out_f32, ref, atol=1e-5, rtol=1e-5), "f32 mismatch vs reference"

    # fast path (default): bf16 operands, f32/bf16 MXU accumulation per generation
    out = jax.block_until_ready(pose_decoder_pallas(feat, params))
    assert out.shape == (B, S, 7), out.shape
    assert jnp.allclose(out, ref, atol=4e-2, rtol=4e-2), "bf16 mismatch vs reference"

    # ragged row count (n=21) with an explicit small tile -> exercises the single-call
    # cdiv grid and the masked writeback of the partial tail block.
    feat_rag = jax.random.normal(k_feat, (3, 7, FEAT_LEN), jnp.float32)
    ref_rag = pose_decoder_ref(feat_rag, params)
    out_rag = jax.block_until_ready(
        pose_decoder_pallas(feat_rag, params, compute_dtype=jnp.float32, tile_n=16))
    assert out_rag.shape == (3, 7, 7), out_rag.shape
    assert jnp.allclose(out_rag, ref_rag, atol=1e-5, rtol=1e-5), "ragged-tail mismatch"

    print("KERNEL_OK")
</pallas_src>

<mosaic_0001>
module attributes {stable_mosaic.version = 11 : i64} {
  func.func @_pose_decoder_kernel(%arg0: i32, %arg1: memref<16x32xf32, #tpu.memory_space<vmem>>, %arg2: memref<32x512xf32, #tpu.memory_space<vmem>>, %arg3: memref<1x512xf32, #tpu.memory_space<vmem>>, %arg4: memref<512x8xf32, #tpu.memory_space<vmem>>, %arg5: memref<1x8xf32, #tpu.memory_space<vmem>>, %arg6: memref<16x8xf32, #tpu.memory_space<vmem>>) attributes {dimension_semantics = [#tpu.dimension_semantics<parallel>], iteration_bounds = array<i64: 1>, scalar_prefetch = 0 : i64, scratch_operands = 0 : i64, tpu.core_type = #tpu.core_type<tc>, window_params = [{transform_indices = @transform_0, window_bounds = array<i64: 16, 32>}, {pipeline_mode = #tpu.pipeline_mode<synchronous>, transform_indices = @transform_1, window_bounds = array<i64: 32, 512>}, {pipeline_mode = #tpu.pipeline_mode<synchronous>, transform_indices = @transform_2, window_bounds = array<i64: 1, 512>}, {pipeline_mode = #tpu.pipeline_mode<synchronous>, transform_indices = @transform_3, window_bounds = array<i64: 512, 8>}, {pipeline_mode = #tpu.pipeline_mode<synchronous>, transform_indices = @transform_4, window_bounds = array<i64: 1, 8>}, {transform_indices = @transform_5, window_bounds = array<i64: 16, 8>}]} {
    %c0 = arith.constant 0 : index
    %c0_0 = arith.constant 0 : index
    %0 = vector.load %arg1[%c0, %c0_0] : memref<16x32xf32, #tpu.memory_space<vmem>>, vector<16x32xf32>
    %c0_1 = arith.constant 0 : index
    %c0_2 = arith.constant 0 : index
    %1 = vector.load %arg2[%c0_1, %c0_2] : memref<32x512xf32, #tpu.memory_space<vmem>>, vector<32x512xf32>
    %cst = arith.constant dense<0.000000e+00> : vector<16x512xf32>
    %2 = tpu.matmul %0, %1, %cst {dimension_numbers = #tpu.dot_dimension_numbers<[1], [0], [0], [1], [0, 0, 1, 1], [], []>} : vector<16x32xf32>, vector<32x512xf32>, vector<16x512xf32> -> vector<16x512xf32>
    %c0_3 = arith.constant 0 : index
    %c0_4 = arith.constant 0 : index
    %3 = vector.load %arg3[%c0_3, %c0_4] : memref<1x512xf32, #tpu.memory_space<vmem>>, vector<1x512xf32>
    %4 = vector.broadcast %3 : vector<1x512xf32> to vector<16x512xf32>
    %5 = arith.addf %2, %4 : vector<16x512xf32>
    %cst_5 = arith.constant 0.000000e+00 : f32
    %6 = vector.broadcast %cst_5 : f32 to vector<16x512xf32>
    %7 = arith.maximumf %5, %6 : vector<16x512xf32>
    %c0_6 = arith.constant 0 : index
    %c0_7 = arith.constant 0 : index
    %8 = vector.load %arg4[%c0_6, %c0_7] : memref<512x8xf32, #tpu.memory_space<vmem>>, vector<512x8xf32>
    %cst_8 = arith.constant dense<0.000000e+00> : vector<16x8xf32>
    %9 = tpu.matmul %7, %8, %cst_8 {dimension_numbers = #tpu.dot_dimension_numbers<[1], [0], [0], [1], [0, 0, 1, 1], [], []>} : vector<16x512xf32>, vector<512x8xf32>, vector<16x8xf32> -> vector<16x8xf32>
    %c0_9 = arith.constant 0 : index
    %c0_10 = arith.constant 0 : index
    %10 = vector.load %arg5[%c0_9, %c0_10] : memref<1x8xf32, #tpu.memory_space<vmem>>, vector<1x8xf32>
    %11 = vector.broadcast %10 : vector<1x8xf32> to vector<16x8xf32>
    %12 = arith.addf %9, %11 : vector<16x8xf32>
    %13 = tpu.iota {dimensions = array<i32: 1>} : vector<16x8xi32>
    %c3_i32 = arith.constant 3 : i32
    %14 = vector.broadcast %c3_i32 : i32 to vector<16x8xi32>
    %15 = arith.cmpi sge, %13, %14 : vector<16x8xi32>
    %c7_i32 = arith.constant 7 : i32
    %16 = vector.broadcast %c7_i32 : i32 to vector<16x8xi32>
    %17 = arith.cmpi slt, %13, %16 : vector<16x8xi32>
    %18 = arith.andi %15, %17 : vector<16x8xi1>
    %19 = arith.extui %18 : vector<16x8xi1> to vector<16x8xi32>
    %20 = arith.sitofp %19 : vector<16x8xi32> to vector<16x8xf32>
    %21 = arith.mulf %12, %12 : vector<16x8xf32>
    %22 = arith.mulf %21, %20 : vector<16x8xf32>
    %cst_11 = arith.constant dense<0.000000e+00> : vector<16xf32>
    %23 = vector.multi_reduction <add>, %22, %cst_11 [1] : vector<16x8xf32> to vector<16xf32>
    %24 = vector.shape_cast %23 : vector<16xf32> to vector<16x1xf32>
    %cst_12 = arith.constant 9.99999996E-13 : f32
    %25 = vector.broadcast %cst_12 : f32 to vector<16x1xf32>
    %26 = arith.addf %25, %24 : vector<16x1xf32>
    %27 = math.rsqrt %26 : vector<16x1xf32>
    %c3_i32_13 = arith.constant 3 : i32
    %28 = vector.broadcast %c3_i32_13 : i32 to vector<16x8xi32>
    %29 = arith.cmpi slt, %13, %28 : vector<16x8xi32>
    %30 = math.tanh %12 : vector<16x8xf32>
    %31 = vector.broadcast %27 : vector<16x1xf32> to vector<16x8xf32>
    %32 = arith.mulf %12, %31 : vector<16x8xf32>
    %33 = arith.select %29, %30, %32 : vector<16x8xi1>, vector<16x8xf32>
    %c0_14 = arith.constant 0 : index
    %c0_15 = arith.constant 0 : index
    %34 = vector.load %arg6[%c0_14, %c0_15] : memref<16x8xf32, #tpu.memory_space<vmem>>, vector<16x8xf32>
    tpu.vector_store %arg6[%c0_14, %c0_15], %33 {strides = array<i32>} : memref<16x8xf32, #tpu.memory_space<vmem>>, vector<16x8xf32>,
    return
  }
  func.func @transform_0(%arg0: i32) -> (i32, i32) {
    %c0_i32 = arith.constant 0 : i32
    %c0_i32_0 = arith.constant 0 : i32
    return %arg0, %c0_i32 : i32, i32
  }
  func.func @transform_1(%arg0: i32) -> (i32, i32) {
    %c0_i32 = arith.constant 0 : i32
    %c0_i32_0 = arith.constant 0 : i32
    %c0_i32_1 = arith.constant 0 : i32
    return %c0_i32, %c0_i32_0 : i32, i32
  }
  func.func @transform_2(%arg0: i32) -> (i32, i32) {
    %c0_i32 = arith.constant 0 : i32
    %c0_i32_0 = arith.constant 0 : i32
    %c0_i32_1 = arith.constant 0 : i32
    return %c0_i32, %c0_i32_0 : i32, i32
  }
  func.func @transform_3(%arg0: i32) -> (i32, i32) {
    %c0_i32 = arith.constant 0 : i32
    %c0_i32_0 = arith.constant 0 : i32
    %c0_i32_1 = arith.constant 0 : i32
    return %c0_i32, %c0_i32_0 : i32, i32
  }
  func.func @transform_4(%arg0: i32) -> (i32, i32) {
    %c0_i32 = arith.constant 0 : i32
    %c0_i32_0 = arith.constant 0 : i32
    %c0_i32_1 = arith.constant 0 : i32
    return %c0_i32, %c0_i32_0 : i32, i32
  }
  func.func @transform_5(%arg0: i32) -> (i32, i32) {
    %c0_i32 = arith.constant 0 : i32
    %c0_i32_0 = arith.constant 0 : i32
    return %arg0, %c0_i32 : i32, i32
  }
}

</mosaic_0001>

<llo_original>
// kernel: tpu_custom_call.1
$region0: #{tpu_custom_call.1}
  #allocation0 [shape = 'u32[]', space=smem, size = 0x4, offset = 0x4, fixed_abs, tag = 'smem constant byte address 0x4 - core index']
  #allocation1 [shape = 'u32[144,128]{1,0:T(1,128)}', space=vmem, size = 0x12000, scoped, tag = 'internal scratch']
  %s0 = inlined_call_operand.vmem [shape: f32[16,32], index: 0, kind: input, shape index: {}]
  %s1 = inlined_call_operand.vmem [shape: f32[32,512], index: 1, kind: input, shape index: {}]
  %s2 = inlined_call_operand.vmem [shape: f32[1,512], index: 2, kind: input, shape index: {}]
  %s3 = inlined_call_operand.vmem [shape: f32[512,8], index: 3, kind: input, shape index: {}]
  %s4 = inlined_call_operand.vmem [shape: f32[1,8], index: 4, kind: input, shape index: {}]
  %s5 = inlined_call_operand.vmem [shape: f32[16,8], index: 5, kind: output, shape index: {}]
  %s6 = sld [smem:[#allocation0]]
  $region30: #{tpu_custom_call.1} parent=0
    _
  %s8 = ssub.s32 1, %s6
  %s9 = scalar_select 0, %s8, %s6
  // Predicated region
  $region2: #{tpu_custom_call.1} parent=0 // pred_check
    _
  $region3: #{tpu_custom_call.1} parent=0 // pred_check_branch
    %11 = sbr.rel (0) target = $region5
  $region4: #{tpu_custom_call.1} parent=0 // pred_region
    _
  $region5: #{tpu_custom_call.1} parent=0 // pred_fallthru
    _
  // Predicated region
  $region6: #{tpu_custom_call.1} parent=0 // pred_check
    _
  $region7: #{tpu_custom_call.1} parent=0 // pred_check_branch
    %13 = sbr.rel (0) target = $region9
  $region8: #{tpu_custom_call.1} parent=0 // pred_region
    _
  $region9: #{tpu_custom_call.1} parent=0 // pred_fallthru
    _
  // Predicated region
  $region10: #{tpu_custom_call.1} parent=0 // pred_check
    _
  $region11: #{tpu_custom_call.1} parent=0 // pred_check_branch
    %15 = sbr.rel (0) target = $region13
  $region12: #{tpu_custom_call.1} parent=0 // pred_region
    _
  $region13: #{tpu_custom_call.1} parent=0 // pred_fallthru
    _
  // Predicated region
  $region14: #{tpu_custom_call.1} parent=0 // pred_check
    _
  $region15: #{tpu_custom_call.1} parent=0 // pred_check_branch
    %17 = sbr.rel (0) target = $region17
  $region16: #{tpu_custom_call.1} parent=0 // pred_region
    _
  $region17: #{tpu_custom_call.1} parent=0 // pred_fallthru
    _
  // Predicated region
  $region18: #{tpu_custom_call.1} parent=0 // pred_check
    _
  $region19: #{tpu_custom_call.1} parent=0 // pred_check_branch
    %19 = sbr.rel (0) target = $region21
  $region20: #{tpu_custom_call.1} parent=0 // pred_region
    _
  $region21: #{tpu_custom_call.1} parent=0 // pred_fallthru
    _
  %v20 = vld [vmem:[%s0] sm:$0xff]
  %v21 = vld [vmem:[%s0 + $0x8] sm:$0xff]
  %v22 = vld [vmem:[%s1] sm:$0xff]
  %v23 = vld [vmem:[%s1 + $0x8] sm:$0xff]
  %v24 = vld [vmem:[%s1 + $0x10] sm:$0xff]
  %v25 = vld [vmem:[%s1 + $0x18] sm:$0xff]
  %v26 = vld [vmem:[%s1 + $0x20] sm:$0xff]
  %v27 = vld [vmem:[%s1 + $0x28] sm:$0xff]
  %v28 = vld [vmem:[%s1 + $0x30] sm:$0xff]
  %v29 = vld [vmem:[%s1 + $0x38] sm:$0xff]
  %v30 = vld [vmem:[%s1 + $0x40] sm:$0xff]
  %v31 = vld [vmem:[%s1 + $0x48] sm:$0xff]
  %v32 = vld [vmem:[%s1 + $0x50] sm:$0xff]
  %v33 = vld [vmem:[%s1 + $0x58] sm:$0xff]
  %v34 = vld [vmem:[%s1 + $0x60] sm:$0xff]
  %v35 = vld [vmem:[%s1 + $0x68] sm:$0xff]
  %v36 = vld [vmem:[%s1 + $0x70] sm:$0xff]
  %v37 = vld [vmem:[%s1 + $0x78] sm:$0xff]
  %v38 = vld [vmem:[%s2] sm:$0xf]
  %v40 = vlaneseq
  %v41 = vshrl.u32 %v40, 7
  %v42 = vsub.s32 0, %v41
  %v43 = vrot.slane %v38, %v42
  %v44 = vlaneseq
  %v45 = vshrl.u32 %v44, 7
  %v46 = vsub.s32 1, %v45
  %v47 = vrot.slane %v38, %v46
  %v48 = vlaneseq
  %v49 = vshrl.u32 %v48, 7
  %v50 = vsub.s32 2, %v49
  %v51 = vrot.slane %v38, %v50
  %v52 = vlaneseq
  %v53 = vshrl.u32 %v52, 7
  %v54 = vsub.s32 3, %v53
  %v55 = vrot.slane %v38, %v54
  %vm60 = vcmask 261120
  %v62 = vsel %vm60, %v20, 0
  %v65 = vsel %vm60, %v21, 0
  %67 = vmatprep.subr.mxu0 %v23
  %68 = vmatpush1.msra.mxu0 %v22
  %69 = vmatprep.subr.mxu0 %v27
  %70 = vmatpush1.msra.mxu0 %v26
  %71 = vmatprep.subr.mxu0 %v31
  %72 = vmatpush1.msra.mxu0 %v30
  %73 = vmatprep.subr.mxu0 %v35
  %74 = vmatpush1.msra.mxu0 %v34
  %75 = vmatprep.subr.mxu0 0.0
  %76 = vmatpush1.msra.mxu0 0.0
  %77 = vmatprep.subr.mxu0 0.0
  %78 = vmatpush1.msra.mxu0 0.0
  %79 = vmatprep.subr.mxu0 0.0
  %80 = vmatpush1.msra.mxu0 0.0
  %81 = vmatprep.subr.mxu0 0.0
  %82 = vmatpush1.msra.mxu0 0.0
  %83 = vmatprep.subr.mxu0 0.0
  %84 = vmatpush1.msra.mxu0 0.0
  %85 = vmatprep.subr.mxu0 0.0
  %86 = vmatpush1.msra.mxu0 0.0
  %87 = vmatprep.subr.mxu0 0.0
  %88 = vmatpush1.msra.mxu0 0.0
  %89 = vmatprep.subr.mxu0 0.0
  %90 = vmatpush1.msra.mxu0 0.0
  %91 = vmatprep.subr.mxu0 0.0
  %92 = vmatpush1.msra.mxu0 0.0
  %93 = vmatprep.subr.mxu0 0.0
  %94 = vmatpush1.msra.mxu0 0.0
  %95 = vmatprep.subr.mxu0 0.0
  %96 = vmatpush1.msra.mxu0 0.0
  %97 = vmatprep.subr.mxu0 0.0
  %98 = vmatpush1.msra.mxu0 0.0
  %99 = vmatprep.subr.mxu0 0.0
  %100 = vmatpush1.msra.mxu0 0.0
  %101 = vmatprep.subr.mxu0 0.0
  %102 = vmatpush1.msra.mxu0 0.0
  %103 = vmatprep.subr.mxu0 0.0
  %104 = vmatpush1.msra.mxu0 0.0
  %105 = vmatprep.subr.mxu0 0.0
  %106 = vmatpush1.msra.mxu0 0.0
  %107 = vmatprep.subr.mxu0 0.0
  %108 = vmatpush1.msra.mxu0 0.0
  %109 = vmatprep.subr.mxu0 0.0
  %110 = vmatpush1.msra.mxu0 0.0
  %111 = vmatprep.subr.mxu0 0.0
  %112 = vmatpush1.msra.mxu0 0.0
  %113 = vmatprep.subr.mxu0 0.0
  %114 = vmatpush1.msra.mxu0 0.0
  %115 = vmatprep.subr.mxu0 0.0
  %116 = vmatpush1.msra.mxu0 0.0
  %117 = vmatprep.subr.mxu0 0.0
  %118 = vmatpush1.msra.mxu0 0.0
  %119 = vmatprep.subr.mxu0 0.0
  %120 = vmatpush1.msra.mxu0 0.0
  %121 = vmatprep.subr.mxu0 0.0
  %122 = vmatpush1.msra.mxu0 0.0
  %123 = vmatprep.subr.mxu0 0.0
  %124 = vmatpush1.msra.mxu0 0.0
  %125 = vmatprep.subr.mxu0 0.0
  %126 = vmatpush1.msra.mxu0 0.0
  %127 = vmatprep.subr.mxu0 0.0
  %128 = vmatpush1.msra.mxu0 0.0
  %129 = vmatprep.subr.mxu0 0.0
  %130 = vmatpush1.msra.mxu0 0.0
  %131 = vmatprep.mubr.f32.mxu0 0.0
  %132 = vmatmul.mubr.f32.gmra.mrb[0].mxu0 %v62
  %v133 = vpop.f32.mrb[0].mxu0
  %v134 = vadd.f32 %v43, %v133
  %v135 = vpop.f32.mrb[0].mxu0
  %v136 = vadd.f32 %v47, %v135
  %137 = vmatprep.mubr.f32.mxu0 0.0
  %138 = vmatmul.mubr.f32.gmra.mrb[0].mxu0 %v65
  %v139 = vpop.f32.mrb[0].mxu0
  %v140 = vadd.f32 %v43, %v139
  %v141 = vpop.f32.mrb[0].mxu0
  %v142 = vadd.f32 %v47, %v141
  %143 = vdwg.mxu0
  %144 = vmatprep.subr.mxu0 %v25
  %145 = vmatpush1.msra.mxu0 %v24
  %146 = vmatprep.subr.mxu0 %v29
  %147 = vmatpush1.msra.mxu0 %v28
  %148 = vmatprep.subr.mxu0 %v33
  %149 = vmatpush1.msra.mxu0 %v32
  %150 = vmatprep.subr.mxu0 %v37
  %151 = vmatpush1.msra.mxu0 %v36
  %152 = vmatprep.subr.mxu0 0.0
  %153 = vmatpush1.msra.mxu0 0.0
  %154 = vmatprep.subr.mxu0 0.0
  %155 = vmatpush1.msra.mxu0 0.0
  %156 = vmatprep.subr.mxu0 0.0
  %157 = vmatpush1.msra.mxu0 0.0
  %158 = vmatprep.subr.mxu0 0.0
  %159 = vmatpush1.msra.mxu0 0.0
  %160 = vmatprep.subr.mxu0 0.0
  %161 = vmatpush1.msra.mxu0 0.0
  %162 = vmatprep.subr.mxu0 0.0
  %163 = vmatpush1.msra.mxu0 0.0
  %164 = vmatprep.subr.mxu0 0.0
  %165 = vmatpush1.msra.mxu0 0.0
  %166 = vmatprep.subr.mxu0 0.0
  %167 = vmatpush1.msra.mxu0 0.0
  %168 = vmatprep.subr.mxu0 0.0
  %169 = vmatpush1.msra.mxu0 0.0
  %170 = vmatprep.subr.mxu0 0.0
  %171 = vmatpush1.msra.mxu0 0.0
  %172 = vmatprep.subr.mxu0 0.0
  %173 = vmatpush1.msra.mxu0 0.0
  %174 = vmatprep.subr.mxu0 0.0
  %175 = vmatpush1.msra.mxu0 0.0
  %176 = vmatprep.subr.mxu0 0.0
  %177 = vmatpush1.msra.mxu0 0.0
  %178 = vmatprep.subr.mxu0 0.0
  %179 = vmatpush1.msra.mxu0 0.0
  %180 = vmatprep.subr.mxu0 0.0
  %181 = vmatpush1.msra.mxu0 0.0
  %182 = vmatprep.subr.mxu0 0.0
  %183 = vmatpush1.msra.mxu0 0.0
  %184 = vmatprep.subr.mxu0 0.0
  %185 = vmatpush1.msra.mxu0 0.0
  %186 = vmatprep.subr.mxu0 0.0
  %187 = vmatpush1.msra.mxu0 0.0
  %188 = vmatprep.subr.mxu0 0.0
  %189 = vmatpush1.msra.mxu0 0.0
  %190 = vmatprep.subr.mxu0 0.0
  %191 = vmatpush1.msra.mxu0 0.0
  %192 = vmatprep.subr.mxu0 0.0
  %193 = vmatpush1.msra.mxu0 0.0
  %194 = vmatprep.subr.mxu0 0.0
  %195 = vmatpush1.msra.mxu0 0.0
  %196 = vmatprep.subr.mxu0 0.0
  %197 = vmatpush1.msra.mxu0 0.0
  %198 = vmatprep.subr.mxu0 0.0
  %199 = vmatpush1.msra.mxu0 0.0
  %200 = vmatprep.subr.mxu0 0.0
  %201 = vmatpush1.msra.mxu0 0.0
  %202 = vmatprep.subr.mxu0 0.0
  %203 = vmatpush1.msra.mxu0 0.0
  %204 = vmatprep.subr.mxu0 0.0
  %205 = vmatpush1.msra.mxu0 0.0
  %206 = vmatprep.subr.mxu0 0.0
  %207 = vmatpush1.msra.mxu0 0.0
  %208 = vmatprep.mubr.f32.mxu0 0.0
  %209 = vmatmul.mubr.f32.gmra.mrb[0].mxu0 %v62
  %v210 = vpop.f32.mrb[0].mxu0
  %v211 = vadd.f32 %v51, %v210
  %v212 = vpop.f32.mrb[0].mxu0
  %v213 = vadd.f32 %v55, %v212
  %214 = vmatprep.mubr.f32.mxu0 0.0
  %215 = vmatmul.mubr.f32.gmra.mrb[0].mxu0 %v65
  %v216 = vpop.f32.mrb[0].mxu0
  %v217 = vadd.f32 %v51, %v216
  %v218 = vpop.f32.mrb[0].mxu0
  %v219 = vadd.f32 %v55, %v218
  %220 = vdwg.mxu0
  %v221 = vmax.f32 %v134, 0.0
  %v222 = vmax.f32 %v136, 0.0
  %v223 = vmax.f32 %v211, 0.0
  %v224 = vmax.f32 %v213, 0.0
  %v225 = vmax.f32 %v140, 0.0
  %v226 = vmax.f32 %v142, 0.0
  %v227 = vmax.f32 %v217, 0.0
  %v228 = vmax.f32 %v219, 0.0
  %v229 = vld [vmem:[%s3] sm:$0xff]
  %v230 = vld [vmem:[%s3 + $0x8] sm:$0xff]
  %v231 = vld [vmem:[%s3 + $0x10] sm:$0xff]
  %v232 = vld [vmem:[%s3 + $0x18] sm:$0xff]
  %v233 = vld [vmem:[%s3 + $0x20] sm:$0xff]
  %v234 = vld [vmem:[%s3 + $0x28] sm:$0xff]
  %v235 = vld [vmem:[%s3 + $0x30] sm:$0xff]
  %v236 = vld [vmem:[%s3 + $0x38] sm:$0xff]
  %v237 = vld [vmem:[%s3 + $0x40] sm:$0xff]
  %v238 = vld [vmem:[%s3 + $0x48] sm:$0xff]
  %v239 = vld [vmem:[%s3 + $0x50] sm:$0xff]
  %v240 = vld [vmem:[%s3 + $0x58] sm:$0xff]
  %v241 = vld [vmem:[%s3 + $0x60] sm:$0xff]
  %v242 = vld [vmem:[%s3 + $0x68] sm:$0xff]
  %v243 = vld [vmem:[%s3 + $0x70] sm:$0xff]
  %v244 = vld [vmem:[%s3 + $0x78] sm:$0xff]
  %v245 = vld [vmem:[%s3 + $0x80] sm:$0xff]
  %v246 = vld [vmem:[%s3 + $0x88] sm:$0xff]
  %v247 = vld [vmem:[%s3 + $0x90] sm:$0xff]
  %v248 = vld [vmem:[%s3 + $0x98] sm:$0xff]
  %v249 = vld [vmem:[%s3 + $0xa0] sm:$0xff]
  %v250 = vld [vmem:[%s3 + $0xa8] sm:$0xff]
  %v251 = vld [vmem:[%s3 + $0xb0] sm:$0xff]
  %v252 = vld [vmem:[%s3 + $0xb8] sm:$0xff]
  %v253 = vld [vmem:[%s3 + $0xc0] sm:$0xff]
  %v254 = vld [vmem:[%s3 + $0xc8] sm:$0xff]
  %v255 = vld [vmem:[%s3 + $0xd0] sm:$0xff]
  %v256 = vld [vmem:[%s3 + $0xd8] sm:$0xff]
  %v257 = vld [vmem:[%s3 + $0xe0] sm:$0xff]
  %v258 = vld [vmem:[%s3 + $0xe8] sm:$0xff]
  %v259 = vld [vmem:[%s3 + $0xf0] sm:$0xff]
  %v260 = vld [vmem:[%s3 + $0xf8] sm:$0xff]
  %v261 = vld [vmem:[%s3 + $0x100] sm:$0xff]
  %v262 = vld [vmem:[%s3 + $0x108] sm:$0xff]
  %v263 = vld [vmem:[%s3 + $0x110] sm:$0xff]
  %v264 = vld [vmem:[%s3 + $0x118] sm:$0xff]
  %v265 = vld [vmem:[%s3 + $0x120] sm:$0xff]
  %v266 = vld [vmem:[%s3 + $0x128] sm:$0xff]
  %v267 = vld [vmem:[%s3 + $0x130] sm:$0xff]
  %v268 = vld [vmem:[%s3 + $0x138] sm:$0xff]
  %v269 = vld [vmem:[%s3 + $0x140] sm:$0xff]
  %v270 = vld [vmem:[%s3 + $0x148] sm:$0xff]
  %v271 = vld [vmem:[%s3 + $0x150] sm:$0xff]
  %v272 = vld [vmem:[%s3 + $0x158] sm:$0xff]
  %v273 = vld [vmem:[%s3 + $0x160] sm:$0xff]
  %v274 = vld [vmem:[%s3 + $0x168] sm:$0xff]
  %v275 = vld [vmem:[%s3 + $0x170] sm:$0xff]
  %v276 = vld [vmem:[%s3 + $0x178] sm:$0xff]
  %v277 = vld [vmem:[%s3 + $0x180] sm:$0xff]
  %v278 = vld [vmem:[%s3 + $0x188] sm:$0xff]
  %v279 = vld [vmem:[%s3 + $0x190] sm:$0xff]
  %v280 = vld [vmem:[%s3 + $0x198] sm:$0xff]
  %v281 = vld [vmem:[%s3 + $0x1a0] sm:$0xff]
  %v282 = vld [vmem:[%s3 + $0x1a8] sm:$0xff]
  %v283 = vld [vmem:[%s3 + $0x1b0] sm:$0xff]
  %v284 = vld [vmem:[%s3 + $0x1b8] sm:$0xff]
  %v285 = vld [vmem:[%s3 + $0x1c0] sm:$0xff]
  %v286 = vld [vmem:[%s3 + $0x1c8] sm:$0xff]
  %v287 = vld [vmem:[%s3 + $0x1d0] sm:$0xff]
  %v288 = vld [vmem:[%s3 + $0x1d8] sm:$0xff]
  %v289 = vld [vmem:[%s3 + $0x1e0] sm:$0xff]
  %v290 = vld [vmem:[%s3 + $0x1e8] sm:$0xff]
  %v291 = vld [vmem:[%s3 + $0x1f0] sm:$0xff]
  %v292 = vld [vmem:[%s3 + $0x1f8] sm:$0xff]
  %v293 = vld [vmem:[%s4] sm:$0x1]
  %v295 = vlaneseq
  %v296 = vshrl.u32 %v295, 7
  %v297 = vsub.s32 0, %v296
  %v298 = vrot.slane %v293, %v297
  %300 = vmatprep.subr.mxu0 0.0
  %301 = vmatpush1.msra.mxu0 %v229
  %302 = vmatprep.subr.mxu0 0.0
  %303 = vmatpush1.msra.mxu0 %v230
  %304 = vmatprep.subr.mxu0 0.0
  %305 = vmatpush1.msra.mxu0 %v231
  %306 = vmatprep.subr.mxu0 0.0
  %307 = vmatpush1.msra.mxu0 %v232
  %308 = vmatprep.subr.mxu0 0.0
  %309 = vmatpush1.msra.mxu0 %v233
  %310 = vmatprep.subr.mxu0 0.0
  %311 = vmatpush1.msra.mxu0 %v234
  %312 = vmatprep.subr.mxu0 0.0
  %313 = vmatpush1.msra.mxu0 %v235
  %314 = vmatprep.subr.mxu0 0.0
  %315 = vmatpush1.msra.mxu0 %v236
  %316 = vmatprep.subr.mxu0 0.0
  %317 = vmatpush1.msra.mxu0 %v237
  %318 = vmatprep.subr.mxu0 0.0
  %319 = vmatpush1.msra.mxu0 %v238
  %320 = vmatprep.subr.mxu0 0.0
  %321 = vmatpush1.msra.mxu0 %v239
  %322 = vmatprep.subr.mxu0 0.0
  %323 = vmatpush1.msra.mxu0 %v240
  %324 = vmatprep.subr.mxu0 0.0
  %325 = vmatpush1.msra.mxu0 %v241
  %326 = vmatprep.subr.mxu0 0.0
  %327 = vmatpush1.msra.mxu0 %v242
  %328 = vmatprep.subr.mxu0 0.0
  %329 = vmatpush1.msra.mxu0 %v243
  %330 = vmatprep.subr.mxu0 0.0
  %331 = vmatpush1.msra.mxu0 %v244
  %332 = vmatprep.subr.mxu0 0.0
  %333 = vmatpush1.msra.mxu0 %v245
  %334 = vmatprep.subr.mxu0 0.0
  %335 = vmatpush1.msra.mxu0 %v246
  %336 = vmatprep.subr.mxu0 0.0
  %337 = vmatpush1.msra.mxu0 %v247
  %338 = vmatprep.subr.mxu0 0.0
  %339 = vmatpush1.msra.mxu0 %v248
  %340 = vmatprep.subr.mxu0 0.0
  %341 = vmatpush1.msra.mxu0 %v249
  %342 = vmatprep.subr.mxu0 0.0
  %343 = vmatpush1.msra.mxu0 %v250
  %344 = vmatprep.subr.mxu0 0.0
  %345 = vmatpush1.msra.mxu0 %v251
  %346 = vmatprep.subr.mxu0 0.0
  %347 = vmatpush1.msra.mxu0 %v252
  %348 = vmatprep.subr.mxu0 0.0
  %349 = vmatpush1.msra.mxu0 %v253
  %350 = vmatprep.subr.mxu0 0.0
  %351 = vmatpush1.msra.mxu0 %v254
  %352 = vmatprep.subr.mxu0 0.0
  %353 = vmatpush1.msra.mxu0 %v255
  %354 = vmatprep.subr.mxu0 0.0
  %355 = vmatpush1.msra.mxu0 %v256
  %356 = vmatprep.subr.mxu0 0.0
  %357 = vmatpush1.msra.mxu0 %v257
  %358 = vmatprep.subr.mxu0 0.0
  %359 = vmatpush1.msra.mxu0 %v258
  %360 = vmatprep.subr.mxu0 0.0
  %361 = vmatpush1.msra.mxu0 %v259
  %362 = vmatprep.subr.mxu0 0.0
  %363 = vmatpush1.msra.mxu0 %v260
  %364 = vmatprep.mubr.f32.mxu0 %v222
  %365 = vmatmul.mubr.f32.gmra.mrb[0].mxu0 %v221
  %v366 = vpop.f32.mrb[0].mxu0
  %v367 = vadd.f32 %v298, %v366
  %v368 = vpop.f32.mrb[0].mxu0
  %369 = vmatprep.mubr.f32.mxu0 %v226
  %370 = vmatmul.mubr.f32.gmra.mrb[0].mxu0 %v225
  %v371 = vpop.f32.mrb[0].mxu0
  %v372 = vadd.f32 %v298, %v371
  %v373 = vpop.f32.mrb[0].mxu0
  %374 = vdwg.mxu0
  %375 = vmatprep.subr.mxu0 0.0
  %376 = vmatpush1.msra.mxu0 %v261
  %377 = vmatprep.subr.mxu0 0.0
  %378 = vmatpush1.msra.mxu0 %v262
  %379 = vmatprep.subr.mxu0 0.0
  %380 = vmatpush1.msra.mxu0 %v263
  %381 = vmatprep.subr.mxu0 0.0
  %382 = vmatpush1.msra.mxu0 %v264
  %383 = vmatprep.subr.mxu0 0.0
  %384 = vmatpush1.msra.mxu0 %v265
  %385 = vmatprep.subr.mxu0 0.0
  %386 = vmatpush1.msra.mxu0 %v266
  %387 = vmatprep.subr.mxu0 0.0
  %388 = vmatpush1.msra.mxu0 %v267
  %389 = vmatprep.subr.mxu0 0.0
  %390 = vmatpush1.msra.mxu0 %v268
  %391 = vmatprep.subr.mxu0 0.0
  %392 = vmatpush1.msra.mxu0 %v269
  %393 = vmatprep.subr.mxu0 0.0
  %394 = vmatpush1.msra.mxu0 %v270
  %395 = vmatprep.subr.mxu0 0.0
  %396 = vmatpush1.msra.mxu0 %v271
  %397 = vmatprep.subr.mxu0 0.0
  %398 = vmatpush1.msra.mxu0 %v272
  %399 = vmatprep.subr.mxu0 0.0
  %400 = vmatpush1.msra.mxu0 %v273
  %401 = vmatprep.subr.mxu0 0.0
  %402 = vmatpush1.msra.mxu0 %v274
  %403 = vmatprep.subr.mxu0 0.0
  %404 = vmatpush1.msra.mxu0 %v275
  %405 = vmatprep.subr.mxu0 0.0
  %406 = vmatpush1.msra.mxu0 %v276
  %407 = vmatprep.subr.mxu0 0.0
  %408 = vmatpush1.msra.mxu0 %v277
  %409 = vmatprep.subr.mxu0 0.0
  %410 = vmatpush1.msra.mxu0 %v278
  %411 = vmatprep.subr.mxu0 0.0
  %412 = vmatpush1.msra.mxu0 %v279
  %413 = vmatprep.subr.mxu0 0.0
  %414 = vmatpush1.msra.mxu0 %v280
  %415 = vmatprep.subr.mxu0 0.0
  %416 = vmatpush1.msra.mxu0 %v281
  %417 = vmatprep.subr.mxu0 0.0
  %418 = vmatpush1.msra.mxu0 %v282
  %419 = vmatprep.subr.mxu0 0.0
  %420 = vmatpush1.msra.mxu0 %v283
  %421 = vmatprep.subr.mxu0 0.0
  %422 = vmatpush1.msra.mxu0 %v284
  %423 = vmatprep.subr.mxu0 0.0
  %424 = vmatpush1.msra.mxu0 %v285
  %425 = vmatprep.subr.mxu0 0.0
  %426 = vmatpush1.msra.mxu0 %v286
  %427 = vmatprep.subr.mxu0 0.0
  %428 = vmatpush1.msra.mxu0 %v287
  %429 = vmatprep.subr.mxu0 0.0
  %430 = vmatpush1.msra.mxu0 %v288
  %431 = vmatprep.subr.mxu0 0.0
  %432 = vmatpush1.msra.mxu0 %v289
  %433 = vmatprep.subr.mxu0 0.0
  %434 = vmatpush1.msra.mxu0 %v290
  %435 = vmatprep.subr.mxu0 0.0
  %436 = vmatpush1.msra.mxu0 %v291
  %437 = vmatprep.subr.mxu0 0.0
  %438 = vmatpush1.msra.mxu0 %v292
  %439 = vmatprep.mubr.f32.mxu0 %v224
  %440 = vmatmul.mubr.f32.gmra.mrb[0].mxu0 %v223
  %v441 = vpop.f32.mrb[0].mxu0
  %v442 = vadd.f32 %v367, %v441
  %v443 = vpop.f32.mrb[0].mxu0
  %444 = vmatprep.mubr.f32.mxu0 %v228
  %445 = vmatmul.mubr.f32.gmra.mrb[0].mxu0 %v227
  %v446 = vpop.f32.mrb[0].mxu0
  %v447 = vadd.f32 %v372, %v446
  %v448 = vpop.f32.mrb[0].mxu0
  %449 = vdwg.mxu0
  %v450 = vlaneseq
  %v451 = vand.u32 %v450, 127
  %vm452 = vcmp.ge.s32.totalorder %v451, 3
  %vm453 = vcmp.lt.s32.totalorder %v451, 7
  %vm454 = vmand %vm452, %vm453
  %v455 = vsel %vm454, 1, 0
  %v456 = vcvt.s32.f32 %v455
  %v457 = vmul.f32 %v442, %v442
  %v458 = vmul.f32 %v447, %v447
  %v459 = vmul.f32 %v457, %v456
  %v460 = vmul.f32 %v458, %v456
  %vm461 = vcmask 64512
  %v462 = vsel %vm461, %v459, 0.0
  %463 = vadd.xlane.f32.xlu0 %v462
  %v464 = vpop.xlane.xlu0 %463
  %v465 = vsel %vm461, %v460, 0.0
  %466 = vadd.xlane.f32.xlu0 %v465
  %v467 = vpop.xlane.xlu0 %466
  %v468 = vadd.f32 %v464, 1e-12
  %v469 = vadd.f32 %v467, 1e-12
  %v470 = vrsqrt.pop %v468
  %v471 = vrsqrt.pop %v469
  %vm472 = vcmp.lt.s32.totalorder %v451, 3
  %v473 = vtanh.pop %v442
  %v474 = vtanh.pop %v447
  %v475 = vmul.f32 %v442, %v470
  %v476 = vmul.f32 %v447, %v471
  %v477 = vsel %vm472, %v473, %v475
  %v478 = vsel %vm472, %v474, %v476
  %479 = vst.msk [vmem:[%s5] sm:$0xff] %vm461, %v477
  %480 = vst.msk [vmem:[%s5 + $0x8] sm:$0xff] %vm461, %v478
  // Predicated region
  $region22: #{tpu_custom_call.1} parent=0 // pred_check
    _
  $region23: #{tpu_custom_call.1} parent=0 // pred_check_branch
    %482 = sbr.rel (0) target = $region25
  $region24: #{tpu_custom_call.1} parent=0 // pred_region
    _
  $region25: #{tpu_custom_call.1} parent=0 // pred_fallthru
    _
  // Predicated region
  $region26: #{tpu_custom_call.1} parent=0 // pred_check
    _
  $region27: #{tpu_custom_call.1} parent=0 // pred_check_branch
    %484 = sbr.rel (0) target = $region29
  $region28: #{tpu_custom_call.1} parent=0 // pred_region
    _
  $region29: #{tpu_custom_call.1} parent=0 // pred_fallthru
    _

</llo_original>
